<compile_context>
chip_gen: v5e
topology: v5e:2x2
jax: 0.10.0
libtpu: 0.0.40
codegen_flags: <defaults>
</compile_context>

<pallas_src>
import functools

import jax
import jax.numpy as jnp
from jax import lax
from jax.experimental import pallas as pl
from jax.experimental.pallas import tpu as pltpu


# ---------------------------------------------------------------------------
# complex64 <-> interleaved float32 views.
# Zero-copy bitcast when supported; otherwise one explicit pack/unpack pass.
# ---------------------------------------------------------------------------
@functools.lru_cache(maxsize=None)
def _complex_bitcast_supported() -> bool:
    try:
        probe = jnp.array([1.0 + 2.0j], dtype=jnp.complex64)
        pair = jax.lax.bitcast_convert_type(probe, jnp.float32)    # (1, 2) f32
        back = jax.lax.bitcast_convert_type(pair, jnp.complex64)   # (1,)  c64
        jax.block_until_ready(back)
        return (pair.shape == (1, 2)
                and bool(jnp.allclose(pair[0], jnp.array([1.0, 2.0], jnp.float32)))
                and bool(jnp.allclose(back, probe)))
    except Exception:
        return False


def _to_interleaved_f32(x):
    """complex64 (...) -> float32 (..., 2) with [re, im] in the minor dim."""
    if _complex_bitcast_supported():
        return jax.lax.bitcast_convert_type(x, jnp.float32)        # free view
    return jnp.stack([jnp.real(x), jnp.imag(x)], axis=-1)          # one pack pass


def _from_interleaved_f32(y):
    """float32 (..., 2) with [re, im] in the minor dim -> complex64 (...)."""
    if _complex_bitcast_supported():
        return jax.lax.bitcast_convert_type(y, jnp.complex64)      # free view
    return jax.lax.complex(y[..., 0], y[..., 1]).astype(jnp.complex64)


# ---------------------------------------------------------------------------
# Kernel
# ---------------------------------------------------------------------------
def _outconv_kernel(params_ref, x_ref, y_ref, *, cin, cout, strip):
    """Strip-mined VPU complex MAC over interleaved re/im lanes.

    params_ref: SMEM f32 [wr(cout*cin) | wi(cout*cin) | br(cout) | bi(cout)]
                (scalar-prefetched).
    x_ref:      VMEM f32 (1, cin,  r_tile, 128); even lanes = Re, odd = Im.
    y_ref:      VMEM f32 (1, cout, r_tile, 128); same interleaving.
    """
    nw = cout * cin
    r_tile = x_ref.shape[2]
    nlanes = x_ref.shape[3]            # always 128
    assert r_tile % strip == 0
    n_strips = r_tile // strip

    # --- scalars from SMEM, read once and reused across the whole block ----
    wr = [[params_ref[co * cin + ci] for ci in range(cin)] for co in range(cout)]
    wi = [[params_ref[nw + co * cin + ci] for ci in range(cin)] for co in range(cout)]
    br = [params_ref[2 * nw + co] for co in range(cout)]
    bi = [params_ref[2 * nw + cout + co] for co in range(cout)]

    # --- lane-parity constants, hoisted out of the strip loop --------------
    lane = lax.broadcasted_iota(jnp.int32, (strip, nlanes), 1)
    even = (lane & 1) == 0             # True on the "real" slots
    partner = lane ^ 1                 # paired re<->im lane
    # Two XLU rotations give {x[j-1], x[j+1]}; decide which one holds the
    # partner lane from a rolled iota (independent of rotate convention).
    src1 = pltpu.roll(lane, 1, 1)
    take1 = src1 == partner
    sign = jnp.where(even, jnp.float32(-1.0), jnp.float32(1.0))
    bias_vec = [jnp.where(even, br[co], bi[co]) for co in range(cout)]

    def strip_body(s, carry):
        off = pl.multiple_of(s * strip, strip)
        v, u = [], []
        for ci in range(cin):                       # load each x strip ONCE
            xv = x_ref[0, ci, pl.ds(off, strip), :]
            r1 = pltpu.roll(xv, 1, 1)               # XLU (free slot vs VALU)
            r2 = pltpu.roll(xv, nlanes - 1, 1)
            v.append(xv)
            # u = -Im(pixel) on real slots, +Re(pixel) on imag slots.
            u.append(sign * jnp.where(take1, r1, r2))
        for co in range(cout):
            acc = bias_vec[co]                      # bias folded into accum
            for ci in range(cin):
                acc = acc + wr[co][ci] * v[ci] + wi[co][ci] * u[ci]
            y_ref[0, co, pl.ds(off, strip), :] = acc
        return carry

    lax.fori_loop(0, n_strips, strip_body, 0)


# ---------------------------------------------------------------------------
# Wrapper
# ---------------------------------------------------------------------------
def outconv_pallas(x, weight, bias, *, max_tile_rows=512):
    """1x1 complex conv (OutConv.forward).

    x:      (N, Cin, H, W) complex64 (NCHW, as in PyTorch)
    weight: (Cout, Cin, 1, 1) complex64
    bias:   (Cout,) complex64
    returns (N, Cout, H, W) complex64
    """
    x = x.astype(jnp.complex64)
    N, Cin, H, W = x.shape
    Cout = weight.shape[0]
    HW2 = H * W * 2                      # interleaved f32 elements per plane

    # ---- interleaved f32 view of x (zero-copy when bitcast is supported) --
    x_f32 = _to_interleaved_f32(x)               # (N, Cin, H, W, 2)
    x_flat = x_f32.reshape(N, Cin, HW2)          # contiguous reshape, free

    # ---- tiling: fixed large row tile + cdiv grid, rows padded to 8 -------
    rows = -(-HW2 // 128)
    rows8 = -(-rows // 8) * 8
    r_tile = min(max_tile_rows, rows8)
    # v7x has 2 TensorCores: guarantee >= 2 parallel grid steps when possible.
    if N == 1 and rows8 <= r_tile and rows8 >= 16:
        r_tile = -(-(rows8 // 2) // 8) * 8
    n_blocks = -(-rows8 // r_tile)
    rows_pad = n_blocks * r_tile
    HW2_pad = rows_pad * 128
    if HW2_pad != HW2:
        x_flat = jnp.pad(x_flat, ((0, 0), (0, 0), (0, HW2_pad - HW2)))
    x_in = x_flat.reshape(N, Cin, rows_pad, 128)

    # ---- scalar params -> one tiny SMEM table: [wr | wi | br | bi] --------
    w2d = weight.reshape(Cout, Cin)
    params = jnp.concatenate([
        jnp.real(w2d).astype(jnp.float32).reshape(-1),
        jnp.imag(w2d).astype(jnp.float32).reshape(-1),
        jnp.real(bias).astype(jnp.float32).reshape(-1),
        jnp.imag(bias).astype(jnp.float32).reshape(-1),
    ])

    strip = 16 if r_tile % 16 == 0 else 8
    grid = (N, n_blocks)

    # Raise the scoped-VMEM limit only if large tiles actually need it
    # (blocks are double-buffered by the pipeline; v5e default is 16 MiB).
    vmem_needed = 2 * (Cin + Cout) * r_tile * 128 * 4
    vmem_limit = None
    if vmem_needed > 12 * (1 << 20):
        vmem_limit = min(max(2 * vmem_needed, 32 << 20), 64 << 20)

    out = pl.pallas_call(
        functools.partial(_outconv_kernel, cin=Cin, cout=Cout, strip=strip),
        out_shape=jax.ShapeDtypeStruct((N, Cout, rows_pad, 128), jnp.float32),
        grid_spec=pltpu.PrefetchScalarGridSpec(
            num_scalar_prefetch=1,
            grid=grid,
            in_specs=[pl.BlockSpec((1, Cin, r_tile, 128),
                                   lambda n, j, p: (n, 0, j, 0))],
            out_specs=pl.BlockSpec((1, Cout, r_tile, 128),
                                   lambda n, j, p: (n, 0, j, 0)),
        ),
        compiler_params=pltpu.CompilerParams(
            dimension_semantics=("parallel", "parallel"),
            vmem_limit_bytes=vmem_limit),
    )(params, x_in)

    # ---- interleaved f32 planes -> complex64 NCHW -------------------------
    out = out.reshape(N, Cout, HW2_pad)
    if HW2_pad != HW2:
        out = out[:, :, :HW2]            # drop bias-only garbage in the pad
    out = out.reshape(N, Cout, H, W, 2)
    return _from_interleaved_f32(out)


def outconv_ref(x, weight, bias):
    # Pure-JAX reference: 1x1 complex conv.
    w2d = weight.reshape(weight.shape[0], weight.shape[1])  # (Cout, Cin)
    y = jnp.einsum("nchw,oc->nohw", x, w2d) + bias[None, :, None, None]
    return y.astype(jnp.complex64)


if __name__ == "__main__":
    key = jax.random.PRNGKey(0)
    k1, k2, k3, k4, k5, k6 = jax.random.split(key, 6)

    N, Cin, Cout, H, W = 2, 4, 3, 16, 16

    x = (jax.random.normal(k1, (N, Cin, H, W), jnp.float32)
         + 1j * jax.random.normal(k2, (N, Cin, H, W), jnp.float32)
         ).astype(jnp.complex64)
    weight = (0.1 * jax.random.normal(k3, (Cout, Cin, 1, 1), jnp.float32)
              + 0.1j * jax.random.normal(k4, (Cout, Cin, 1, 1), jnp.float32)
              ).astype(jnp.complex64)
    bias = (0.1 * jax.random.normal(k5, (Cout,), jnp.float32)
            + 0.1j * jax.random.normal(k6, (Cout,), jnp.float32)
            ).astype(jnp.complex64)

    y = outconv_pallas(x, weight, bias)
    y = jax.block_until_ready(y)

    y_ref = outconv_ref(x, weight, bias)
    assert y.shape == (N, Cout, H, W)
    assert y.dtype == jnp.complex64
    assert jnp.allclose(y, y_ref, atol=1e-4, rtol=1e-4)

    print("KERNEL_OK")
</pallas_src>

<mosaic_0001>
module attributes {stable_mosaic.version = 11 : i64} {
  func.func @_outconv_kernel(%arg0: i32, %arg1: i32, %arg2: memref<30xf32, #tpu.memory_space<smem>>, %arg3: memref<1x4x8x128xf32, #tpu.memory_space<vmem>>, %arg4: memref<1x3x8x128xf32, #tpu.memory_space<vmem>>) attributes {dimension_semantics = [#tpu.dimension_semantics<parallel>, #tpu.dimension_semantics<parallel>], iteration_bounds = array<i64: 2, 1>, scalar_prefetch = 1 : i64, scratch_operands = 0 : i64, tpu.core_type = #tpu.core_type<tc>, window_params = [{transform_indices = @transform_0, window_bounds = array<i64: 1, 4, 8, 128>}, {transform_indices = @transform_1, window_bounds = array<i64: 1, 3, 8, 128>}]} {
    %c0 = arith.constant 0 : index
    %0 = memref.load %arg2[%c0] : memref<30xf32, #tpu.memory_space<smem>>
    %c1 = arith.constant 1 : index
    %1 = memref.load %arg2[%c1] : memref<30xf32, #tpu.memory_space<smem>>
    %c2 = arith.constant 2 : index
    %2 = memref.load %arg2[%c2] : memref<30xf32, #tpu.memory_space<smem>>
    %c3 = arith.constant 3 : index
    %3 = memref.load %arg2[%c3] : memref<30xf32, #tpu.memory_space<smem>>
    %c4 = arith.constant 4 : index
    %4 = memref.load %arg2[%c4] : memref<30xf32, #tpu.memory_space<smem>>
    %c5 = arith.constant 5 : index
    %5 = memref.load %arg2[%c5] : memref<30xf32, #tpu.memory_space<smem>>
    %c6 = arith.constant 6 : index
    %6 = memref.load %arg2[%c6] : memref<30xf32, #tpu.memory_space<smem>>
    %c7 = arith.constant 7 : index
    %7 = memref.load %arg2[%c7] : memref<30xf32, #tpu.memory_space<smem>>
    %c8 = arith.constant 8 : index
    %8 = memref.load %arg2[%c8] : memref<30xf32, #tpu.memory_space<smem>>
    %c9 = arith.constant 9 : index
    %9 = memref.load %arg2[%c9] : memref<30xf32, #tpu.memory_space<smem>>
    %c10 = arith.constant 10 : index
    %10 = memref.load %arg2[%c10] : memref<30xf32, #tpu.memory_space<smem>>
    %c11 = arith.constant 11 : index
    %11 = memref.load %arg2[%c11] : memref<30xf32, #tpu.memory_space<smem>>
    %c12 = arith.constant 12 : index
    %12 = memref.load %arg2[%c12] : memref<30xf32, #tpu.memory_space<smem>>
    %c13 = arith.constant 13 : index
    %13 = memref.load %arg2[%c13] : memref<30xf32, #tpu.memory_space<smem>>
    %c14 = arith.constant 14 : index
    %14 = memref.load %arg2[%c14] : memref<30xf32, #tpu.memory_space<smem>>
    %c15 = arith.constant 15 : index
    %15 = memref.load %arg2[%c15] : memref<30xf32, #tpu.memory_space<smem>>
    %c16 = arith.constant 16 : index
    %16 = memref.load %arg2[%c16] : memref<30xf32, #tpu.memory_space<smem>>
    %c17 = arith.constant 17 : index
    %17 = memref.load %arg2[%c17] : memref<30xf32, #tpu.memory_space<smem>>
    %c18 = arith.constant 18 : index
    %18 = memref.load %arg2[%c18] : memref<30xf32, #tpu.memory_space<smem>>
    %c19 = arith.constant 19 : index
    %19 = memref.load %arg2[%c19] : memref<30xf32, #tpu.memory_space<smem>>
    %c20 = arith.constant 20 : index
    %20 = memref.load %arg2[%c20] : memref<30xf32, #tpu.memory_space<smem>>
    %c21 = arith.constant 21 : index
    %21 = memref.load %arg2[%c21] : memref<30xf32, #tpu.memory_space<smem>>
    %c22 = arith.constant 22 : index
    %22 = memref.load %arg2[%c22] : memref<30xf32, #tpu.memory_space<smem>>
    %c23 = arith.constant 23 : index
    %23 = memref.load %arg2[%c23] : memref<30xf32, #tpu.memory_space<smem>>
    %c24 = arith.constant 24 : index
    %24 = memref.load %arg2[%c24] : memref<30xf32, #tpu.memory_space<smem>>
    %c25 = arith.constant 25 : index
    %25 = memref.load %arg2[%c25] : memref<30xf32, #tpu.memory_space<smem>>
    %c26 = arith.constant 26 : index
    %26 = memref.load %arg2[%c26] : memref<30xf32, #tpu.memory_space<smem>>
    %c27 = arith.constant 27 : index
    %27 = memref.load %arg2[%c27] : memref<30xf32, #tpu.memory_space<smem>>
    %c28 = arith.constant 28 : index
    %28 = memref.load %arg2[%c28] : memref<30xf32, #tpu.memory_space<smem>>
    %c29 = arith.constant 29 : index
    %29 = memref.load %arg2[%c29] : memref<30xf32, #tpu.memory_space<smem>>
    %30 = tpu.iota {dimensions = array<i32: 1>} : vector<8x128xi32>
    %c1_i32 = arith.constant 1 : i32
    %31 = vector.broadcast %c1_i32 : i32 to vector<8x128xi32>
    %32 = arith.andi %30, %31 : vector<8x128xi32>
    %c0_i32 = arith.constant 0 : i32
    %33 = vector.broadcast %c0_i32 : i32 to vector<8x128xi32>
    %34 = arith.cmpi eq, %32, %33 : vector<8x128xi32>
    %c1_i32_0 = arith.constant 1 : i32
    %35 = vector.broadcast %c1_i32_0 : i32 to vector<8x128xi32>
    %36 = arith.xori %30, %35 : vector<8x128xi32>
    %c1_i32_1 = arith.constant 1 : i32
    %37 = tpu.dynamic_rotate %30 by %c1_i32_1 dim 1 : vector<8x128xi32>, i32 -> vector<8x128xi32>
    %38 = arith.cmpi eq, %37, %36 : vector<8x128xi32>
    %cst = arith.constant -1.000000e+00 : f32
    %cst_2 = arith.constant 1.000000e+00 : f32
    %39 = vector.broadcast %cst : f32 to vector<8x128xf32>
    %40 = vector.broadcast %cst_2 : f32 to vector<8x128xf32>
    %41 = arith.select %34, %39, %40 : vector<8x128xi1>, vector<8x128xf32>
    %42 = vector.broadcast %24 : f32 to vector<8x128xf32>
    %43 = vector.broadcast %27 : f32 to vector<8x128xf32>
    %44 = arith.select %34, %42, %43 : vector<8x128xi1>, vector<8x128xf32>
    %45 = vector.broadcast %25 : f32 to vector<8x128xf32>
    %46 = vector.broadcast %28 : f32 to vector<8x128xf32>
    %47 = arith.select %34, %45, %46 : vector<8x128xi1>, vector<8x128xf32>
    %48 = vector.broadcast %26 : f32 to vector<8x128xf32>
    %49 = vector.broadcast %29 : f32 to vector<8x128xf32>
    %50 = arith.select %34, %48, %49 : vector<8x128xi1>, vector<8x128xf32>
    %c0_i32_3 = arith.constant 0 : i32
    %c8_i32 = arith.constant 8 : i32
    %51 = arith.muli %c0_i32_3, %c8_i32 : i32
    %52 = tpu.assume_multiple %51, 8 : i32
    %c0_4 = arith.constant 0 : index
    %c0_5 = arith.constant 0 : index
    %53 = arith.index_cast %52 : i32 to index
    %c0_6 = arith.constant 0 : index
    %54 = vector.load %arg3[%c0_4, %c0_5, %53, %c0_6] : memref<1x4x8x128xf32, #tpu.memory_space<vmem>>, vector<1x1x8x128xf32>
    %55 = vector.shape_cast %54 : vector<1x1x8x128xf32> to vector<8x128xf32>
    %c1_i32_7 = arith.constant 1 : i32
    %56 = tpu.dynamic_rotate %55 by %c1_i32_7 dim 1 : vector<8x128xf32>, i32 -> vector<8x128xf32>
    %c127_i32 = arith.constant 127 : i32
    %57 = tpu.dynamic_rotate %55 by %c127_i32 dim 1 : vector<8x128xf32>, i32 -> vector<8x128xf32>
    %58 = arith.select %38, %56, %57 : vector<8x128xi1>, vector<8x128xf32>
    %59 = arith.mulf %41, %58 : vector<8x128xf32>
    %c0_8 = arith.constant 0 : index
    %c1_9 = arith.constant 1 : index
    %60 = arith.index_cast %52 : i32 to index
    %c0_10 = arith.constant 0 : index
    %61 = vector.load %arg3[%c0_8, %c1_9, %60, %c0_10] : memref<1x4x8x128xf32, #tpu.memory_space<vmem>>, vector<1x1x8x128xf32>
    %62 = vector.shape_cast %61 : vector<1x1x8x128xf32> to vector<8x128xf32>
    %c1_i32_11 = arith.constant 1 : i32
    %63 = tpu.dynamic_rotate %62 by %c1_i32_11 dim 1 : vector<8x128xf32>, i32 -> vector<8x128xf32>
    %c127_i32_12 = arith.constant 127 : i32
    %64 = tpu.dynamic_rotate %62 by %c127_i32_12 dim 1 : vector<8x128xf32>, i32 -> vector<8x128xf32>
    %65 = arith.select %38, %63, %64 : vector<8x128xi1>, vector<8x128xf32>
    %66 = arith.mulf %41, %65 : vector<8x128xf32>
    %c0_13 = arith.constant 0 : index
    %c2_14 = arith.constant 2 : index
    %67 = arith.index_cast %52 : i32 to index
    %c0_15 = arith.constant 0 : index
    %68 = vector.load %arg3[%c0_13, %c2_14, %67, %c0_15] : memref<1x4x8x128xf32, #tpu.memory_space<vmem>>, vector<1x1x8x128xf32>
    %69 = vector.shape_cast %68 : vector<1x1x8x128xf32> to vector<8x128xf32>
    %c1_i32_16 = arith.constant 1 : i32
    %70 = tpu.dynamic_rotate %69 by %c1_i32_16 dim 1 : vector<8x128xf32>, i32 -> vector<8x128xf32>
    %c127_i32_17 = arith.constant 127 : i32
    %71 = tpu.dynamic_rotate %69 by %c127_i32_17 dim 1 : vector<8x128xf32>, i32 -> vector<8x128xf32>
    %72 = arith.select %38, %70, %71 : vector<8x128xi1>, vector<8x128xf32>
    %73 = arith.mulf %41, %72 : vector<8x128xf32>
    %c0_18 = arith.constant 0 : index
    %c3_19 = arith.constant 3 : index
    %74 = arith.index_cast %52 : i32 to index
    %c0_20 = arith.constant 0 : index
    %75 = vector.load %arg3[%c0_18, %c3_19, %74, %c0_20] : memref<1x4x8x128xf32, #tpu.memory_space<vmem>>, vector<1x1x8x128xf32>
    %76 = vector.shape_cast %75 : vector<1x1x8x128xf32> to vector<8x128xf32>
    %c1_i32_21 = arith.constant 1 : i32
    %77 = tpu.dynamic_rotate %76 by %c1_i32_21 dim 1 : vector<8x128xf32>, i32 -> vector<8x128xf32>
    %c127_i32_22 = arith.constant 127 : i32
    %78 = tpu.dynamic_rotate %76 by %c127_i32_22 dim 1 : vector<8x128xf32>, i32 -> vector<8x128xf32>
    %79 = arith.select %38, %77, %78 : vector<8x128xi1>, vector<8x128xf32>
    %80 = arith.mulf %41, %79 : vector<8x128xf32>
    %81 = vector.broadcast %0 : f32 to vector<8x128xf32>
    %82 = arith.mulf %81, %55 : vector<8x128xf32>
    %83 = arith.addf %44, %82 : vector<8x128xf32>
    %84 = vector.broadcast %12 : f32 to vector<8x128xf32>
    %85 = arith.mulf %84, %59 : vector<8x128xf32>
    %86 = arith.addf %83, %85 : vector<8x128xf32>
    %87 = vector.broadcast %1 : f32 to vector<8x128xf32>
    %88 = arith.mulf %87, %62 : vector<8x128xf32>
    %89 = arith.addf %86, %88 : vector<8x128xf32>
    %90 = vector.broadcast %13 : f32 to vector<8x128xf32>
    %91 = arith.mulf %90, %66 : vector<8x128xf32>
    %92 = arith.addf %89, %91 : vector<8x128xf32>
    %93 = vector.broadcast %2 : f32 to vector<8x128xf32>
    %94 = arith.mulf %93, %69 : vector<8x128xf32>
    %95 = arith.addf %92, %94 : vector<8x128xf32>
    %96 = vector.broadcast %14 : f32 to vector<8x128xf32>
    %97 = arith.mulf %96, %73 : vector<8x128xf32>
    %98 = arith.addf %95, %97 : vector<8x128xf32>
    %99 = vector.broadcast %3 : f32 to vector<8x128xf32>
    %100 = arith.mulf %99, %76 : vector<8x128xf32>
    %101 = arith.addf %98, %100 : vector<8x128xf32>
    %102 = vector.broadcast %15 : f32 to vector<8x128xf32>
    %103 = arith.mulf %102, %80 : vector<8x128xf32>
    %104 = arith.addf %101, %103 : vector<8x128xf32>
    %c0_23 = arith.constant 0 : index
    %c0_24 = arith.constant 0 : index
    %105 = arith.index_cast %52 : i32 to index
    %c0_25 = arith.constant 0 : index
    %106 = vector.load %arg4[%c0_23, %c0_24, %105, %c0_25] : memref<1x3x8x128xf32, #tpu.memory_space<vmem>>, vector<1x1x8x128xf32>
    %107 = vector.shape_cast %106 : vector<1x1x8x128xf32> to vector<8x128xf32>
    %108 = vector.shape_cast %104 : vector<8x128xf32> to vector<1x1x8x128xf32>
    tpu.vector_store %arg4[%c0_23, %c0_24, %105, %c0_25], %108 {strides = array<i32>} : memref<1x3x8x128xf32, #tpu.memory_space<vmem>>, vector<1x1x8x128xf32>,
    %109 = vector.broadcast %4 : f32 to vector<8x128xf32>
    %110 = arith.mulf %109, %55 : vector<8x128xf32>
    %111 = arith.addf %47, %110 : vector<8x128xf32>
    %112 = vector.broadcast %16 : f32 to vector<8x128xf32>
    %113 = arith.mulf %112, %59 : vector<8x128xf32>
    %114 = arith.addf %111, %113 : vector<8x128xf32>
    %115 = vector.broadcast %5 : f32 to vector<8x128xf32>
    %116 = arith.mulf %115, %62 : vector<8x128xf32>
    %117 = arith.addf %114, %116 : vector<8x128xf32>
    %118 = vector.broadcast %17 : f32 to vector<8x128xf32>
    %119 = arith.mulf %118, %66 : vector<8x128xf32>
    %120 = arith.addf %117, %119 : vector<8x128xf32>
    %121 = vector.broadcast %6 : f32 to vector<8x128xf32>
    %122 = arith.mulf %121, %69 : vector<8x128xf32>
    %123 = arith.addf %120, %122 : vector<8x128xf32>
    %124 = vector.broadcast %18 : f32 to vector<8x128xf32>
    %125 = arith.mulf %124, %73 : vector<8x128xf32>
    %126 = arith.addf %123, %125 : vector<8x128xf32>
    %127 = vector.broadcast %7 : f32 to vector<8x128xf32>
    %128 = arith.mulf %127, %76 : vector<8x128xf32>
    %129 = arith.addf %126, %128 : vector<8x128xf32>
    %130 = vector.broadcast %19 : f32 to vector<8x128xf32>
    %131 = arith.mulf %130, %80 : vector<8x128xf32>
    %132 = arith.addf %129, %131 : vector<8x128xf32>
    %c0_26 = arith.constant 0 : index
    %c1_27 = arith.constant 1 : index
    %133 = arith.index_cast %52 : i32 to index
    %c0_28 = arith.constant 0 : index
    %134 = vector.load %arg4[%c0_26, %c1_27, %133, %c0_28] : memref<1x3x8x128xf32, #tpu.memory_space<vmem>>, vector<1x1x8x128xf32>
    %135 = vector.shape_cast %134 : vector<1x1x8x128xf32> to vector<8x128xf32>
    %136 = vector.shape_cast %132 : vector<8x128xf32> to vector<1x1x8x128xf32>
    tpu.vector_store %arg4[%c0_26, %c1_27, %133, %c0_28], %136 {strides = array<i32>} : memref<1x3x8x128xf32, #tpu.memory_space<vmem>>, vector<1x1x8x128xf32>,
    %137 = vector.broadcast %8 : f32 to vector<8x128xf32>
    %138 = arith.mulf %137, %55 : vector<8x128xf32>
    %139 = arith.addf %50, %138 : vector<8x128xf32>
    %140 = vector.broadcast %20 : f32 to vector<8x128xf32>
    %141 = arith.mulf %140, %59 : vector<8x128xf32>
    %142 = arith.addf %139, %141 : vector<8x128xf32>
    %143 = vector.broadcast %9 : f32 to vector<8x128xf32>
    %144 = arith.mulf %143, %62 : vector<8x128xf32>
    %145 = arith.addf %142, %144 : vector<8x128xf32>
    %146 = vector.broadcast %21 : f32 to vector<8x128xf32>
    %147 = arith.mulf %146, %66 : vector<8x128xf32>
    %148 = arith.addf %145, %147 : vector<8x128xf32>
    %149 = vector.broadcast %10 : f32 to vector<8x128xf32>
    %150 = arith.mulf %149, %69 : vector<8x128xf32>
    %151 = arith.addf %148, %150 : vector<8x128xf32>
    %152 = vector.broadcast %22 : f32 to vector<8x128xf32>
    %153 = arith.mulf %152, %73 : vector<8x128xf32>
    %154 = arith.addf %151, %153 : vector<8x128xf32>
    %155 = vector.broadcast %11 : f32 to vector<8x128xf32>
    %156 = arith.mulf %155, %76 : vector<8x128xf32>
    %157 = arith.addf %154, %156 : vector<8x128xf32>
    %158 = vector.broadcast %23 : f32 to vector<8x128xf32>
    %159 = arith.mulf %158, %80 : vector<8x128xf32>
    %160 = arith.addf %157, %159 : vector<8x128xf32>
    %c0_29 = arith.constant 0 : index
    %c2_30 = arith.constant 2 : index
    %161 = arith.index_cast %52 : i32 to index
    %c0_31 = arith.constant 0 : index
    %162 = vector.load %arg4[%c0_29, %c2_30, %161, %c0_31] : memref<1x3x8x128xf32, #tpu.memory_space<vmem>>, vector<1x1x8x128xf32>
    %163 = vector.shape_cast %162 : vector<1x1x8x128xf32> to vector<8x128xf32>
    %164 = vector.shape_cast %160 : vector<8x128xf32> to vector<1x1x8x128xf32>
    tpu.vector_store %arg4[%c0_29, %c2_30, %161, %c0_31], %164 {strides = array<i32>} : memref<1x3x8x128xf32, #tpu.memory_space<vmem>>, vector<1x1x8x128xf32>,
    %c1_i32_32 = arith.constant 1 : i32
    return
  }
  func.func @transform_0(%arg0: i32, %arg1: i32, %arg2: memref<30xf32, #tpu.memory_space<smem>>) -> (i32, i32, i32, i32) {
    %c0_i32 = arith.constant 0 : i32
    %c0_i32_0 = arith.constant 0 : i32
    %c0_i32_1 = arith.constant 0 : i32
    return %arg0, %c0_i32, %arg1, %c0_i32_0 : i32, i32, i32, i32
  }
  func.func @transform_1(%arg0: i32, %arg1: i32, %arg2: memref<30xf32, #tpu.memory_space<smem>>) -> (i32, i32, i32, i32) {
    %c0_i32 = arith.constant 0 : i32
    %c0_i32_0 = arith.constant 0 : i32
    %c0_i32_1 = arith.constant 0 : i32
    return %arg0, %c0_i32, %arg1, %c0_i32_0 : i32, i32, i32, i32
  }
}

</mosaic_0001>

<llo_original>
// kernel: tpu_custom_call.1
$region0: #{tpu_custom_call.1}
  #allocation0 [shape = 'u32[]', space=smem, size = 0x4, offset = 0x4, fixed_abs, tag = 'smem constant byte address 0x4 - core index']
  #allocation1 [shape = 'u32[72,128]{1,0:T(1,128)}', space=vmem, size = 0x9000, scoped, tag = 'internal scratch']
  #allocation2 [shape = 's32[1]{0}', space=sflag, size = 0x4, scoped, tag = 'scoped memory for tpu_custom_call.1']
  #allocation3 [shape = 'u8[512]{0}', space=smem, size = 0x200, scoped, tag = 'prefetched SMEM operand 0']
  %s0 = inlined_call_operand.hbm [shape: f32[30], index: 0, kind: input, shape index: {}]
  %s1 = inlined_call_operand.hbm [shape: f32[2,4,8,128], index: 1, kind: input, shape index: {}]
  %s2 = inlined_call_operand.hbm [shape: f32[2,3,8,128], index: 2, kind: output, shape index: {}]
  %s3 = sld [smem:[#allocation0]]
  $region41: #{tpu_custom_call.1} parent=0
    _
  %s5 = ssub.s32 1, %s3
  %s6 = scalar_select 0, %s5, %s3
  %s8 = sshll.u32 %s0, 4
  %s9 = int_to_ptr.hbm [resolvable:$true] %s8
  %11 = dma.hbm_to_smem %s9, 16, [#allocation3], [#allocation2]
  %13 = dma.done [#allocation2], 16
  %14 = sfence
  $region1: #{tpu_custom_call.1} parent=0
    #allocation4 [shape = 'u8[32768]{0}', space=vmem, size = 0x8000, scoped, tag = 'input window, operand 1']
    #allocation5 [shape = 's32[2]{0}', space=sflag, size = 0x8, scoped, tag = 'scoped memory for tpu_custom_call.1']
    #allocation6 [shape = 's32[2]{0}', space=sflag, size = 0x8, scoped, tag = 'scoped memory for tpu_custom_call.1']
    #allocation7 [shape = 'u8[24576]{0}', space=vmem, size = 0x6000, scoped, tag = 'output window, operand 0']
    %15 = vsyncpa [#allocation5], 0
    %s16 = scalar_lea.sflag [#allocation5], 1
    %17 = vsyncpa %s16, 0
    %18 = vsyncpa [#allocation6], 0
    %s19 = scalar_lea.sflag [#allocation6], 1
    %20 = vsyncpa %s19, 0
    loop: start=0, step=1, limit=4
    $region2: #{tpu_custom_call.1} parent=1 // loop_pre_header
      _
    $region3: #{tpu_custom_call.1} parent=1 // loop_header
      %s22 = sphi 0, %s26
      %p23 = scmp.ge.s32.totalorder %s22, 4
      %s29 = sphi 0, %s41
      %s30 = sphi 0, %s37
      %s31 = sphi 0, %s29
      %s32 = sphi 0, %s30
      %s33 = sphi 0, %s31
      %s34 = sphi 0, %s32
      %s46 = sphi 0, %s48
      %s49 = sphi 0, %s46
      %s50 = sphi 0, %s49
      %s66 = sphi 0, %s50
      %s74 = sphi 0, %s76
      %s77 = sphi 0, %s74
      %s78 = sphi 0, %s77
      %s94 = sphi 0, %s78
    $region4: #{tpu_custom_call.1} parent=1 // loop_header_branch
      %25 = sbr.rel (%p23) target = $region8
    $region5: #{tpu_custom_call.1} parent=1 // loop_body
      %s27 = ssub.s32 %s22, 1
      %s28 = ssub.s32 %s22, 2
      %s35 = sadd.s32 1, %s30
      %p36 = scmp.ge.s32.totalorder %s35, 1
      %s37 = scalar_select %p36, 0, %s35
      %s38 = sadd.s32 1, %s29
      %s39 = scalar_select %p36, %s38, %s29
      %p40 = scmp.ge.s32.totalorder %s39, 2
      %s41 = scalar_select %p40, 0, %s39
      %s42 = ssub.s32 %s29, %s41
      %s43 = ssub.s32 %s30, %s37
      %s44 = sor.u32 %s42, %s43
      %p45 = scmp.eq.s32.totalorder %s44, 0
      %s47 = sadd.s32 %s46, 1
      %s48 = scalar_select %p45, %s46, %s47
      %p51 = pneg %p45
      %p52 = scmp.eq.s32.totalorder %s22, 1
      %p53 = por %p51, %p52
      %p54 = scmp.ne.s32.totalorder %s46, %s49
      %p55 = scmp.eq.s32.totalorder %s22, 0
      %p56 = por %p54, %p55
      %p57 = scmp.ne.s32.totalorder %s46, %s49
      %p58 = scmp.eq.s32.totalorder %s27, 1
      %p59 = por %p57, %p58
      %p60 = scmp.ne.s32.totalorder %s49, %s50
      %p61 = scmp.eq.s32.totalorder %s27, 0
      %p62 = por %p60, %p61
      %p63 = scmp.ne.s32.totalorder %s49, %s50
      %p64 = scmp.eq.s32.totalorder %s28, 1
      %p65 = por %p63, %p64
      %p67 = scmp.ne.s32.totalorder %s50, %s66
      %p68 = scmp.eq.s32.totalorder %s28, 0
      %p69 = por %p67, %p68
      %s70 = ssub.s32 %s29, %s41
      %s71 = ssub.s32 %s30, %s37
      %s72 = sor.u32 %s70, %s71
      %p73 = scmp.eq.s32.totalorder %s72, 0
      %s75 = sadd.s32 %s74, 1
      %s76 = scalar_select %p73, %s74, %s75
      %p79 = pneg %p73
      %p80 = scmp.eq.s32.totalorder %s22, 1
      %p81 = por %p79, %p80
      %p82 = scmp.ne.s32.totalorder %s74, %s77
      %p83 = scmp.eq.s32.totalorder %s22, 0
      %p84 = por %p82, %p83
      %p85 = scmp.ne.s32.totalorder %s74, %s77
      %p86 = scmp.eq.s32.totalorder %s27, 1
      %p87 = por %p85, %p86
      %p88 = scmp.ne.s32.totalorder %s77, %s78
      %p89 = scmp.eq.s32.totalorder %s27, 0
      %p90 = por %p88, %p89
      %p91 = scmp.ne.s32.totalorder %s77, %s78
      %p92 = scmp.eq.s32.totalorder %s28, 1
      %p93 = por %p91, %p92
      %p95 = scmp.ne.s32.totalorder %s78, %s94
      %p96 = scmp.eq.s32.totalorder %s28, 0
      %p97 = por %p95, %p96
      %p98 = scmp.le.s32.totalorder 1, %s22
      %p99 = scmp.lt.s32.totalorder %s22, 3
      %p100 = pnand %p98, %p99
      %p101 = pneg %p100
      // Predicated region
      $region9: #{tpu_custom_call.1} parent=5 // pred_check
        _
      $region10: #{tpu_custom_call.1} parent=5 // pred_check_branch
        %103 = sbr.rel (%p100) target = $region12
      $region11: #{tpu_custom_call.1} parent=5 // pred_region
        %s104 = ssub.s32 %s22, 1
      $region12: #{tpu_custom_call.1} parent=5 // pred_fallthru
        _
      %p105 = scmp.lt.s32.totalorder %s22, 2
      // Predicated region
      $region13: #{tpu_custom_call.1} parent=5 // pred_check
        %p106 = pneg %p105
      $region14: #{tpu_custom_call.1} parent=5 // pred_check_branch
        %108 = sbr.rel (%p106) target = $region16
      $region15: #{tpu_custom_call.1} parent=5 // pred_region
        // Predicated region
        $region17: #{tpu_custom_call.1} parent=15 // pred_check
          %p109 = pneg %p56
        $region18: #{tpu_custom_call.1} parent=15 // pred_check_branch
          %111 = sbr.rel (%p109) target = $region20
        $region19: #{tpu_custom_call.1} parent=15 // pred_region
          %s112 = sand.u32 %s46, 1
          %s113 = scalar_lea.sflag [#allocation5], %s112
          %s114 = sand.u32 %s46, 1
          %s115 = smul.addr %s114, 32
          %s116 = scalar_lea.vmem [#allocation4], %s115
          %118 = vsyncadd %s113, 0
          %s119 = smul.addr %s29, 4
          %s120 = sadd.s32 %s30, %s119
          %s121 = smul.addr %s120, 8
          %s122 = scalar_lea.hbm %s1, %s121
          %s123 = sshll.u32 %s122, 4
          %s124 = int_to_ptr.hbm [resolvable:$true] %s123
          %s125 = sshll.u32 %s116, 4
          %s126 = int_to_ptr.vmem [resolvable:$true] %s125
          %131 = dma.hbm_to_vmem [thread:$0]  %s124, 512, %s126, %s113, 128, 128, 8
        $region20: #{tpu_custom_call.1} parent=15 // pred_fallthru
          _
      $region16: #{tpu_custom_call.1} parent=5 // pred_fallthru
        _
      %p132 = scmp.le.s32.totalorder 1, %s22
      %p133 = scmp.lt.s32.totalorder %s22, 3
      %p134 = pnand %p132, %p133
      %p135 = pneg %p134
      // Predicated region
      $region21: #{tpu_custom_call.1} parent=5 // pred_check
        _
      $region22: #{tpu_custom_call.1} parent=5 // pred_check_branch
        %137 = sbr.rel (%p134) target = $region24
      $region23: #{tpu_custom_call.1} parent=5 // pred_region
        %s138 = ssub.s32 %s22, 1
        %s139 = sand.u32 %s49, 1
        %s140 = scalar_lea.sflag [#allocation5], %s139
        %s141 = sand.u32 %s49, 1
        %s142 = smul.addr %s141, 32
        %s143 = scalar_lea.vmem [#allocation4], %s142
        // Predicated region
        $region25: #{tpu_custom_call.1} parent=23 // pred_check
          %p144 = pneg %p62
        $region26: #{tpu_custom_call.1} parent=23 // pred_check_branch
          %146 = sbr.rel (%p144) target = $region28
        $region27: #{tpu_custom_call.1} parent=23 // pred_region
          %148 = dma.done %s140, 512
        $region28: #{tpu_custom_call.1} parent=23 // pred_fallthru
          _
        %s149 = sand.u32 %s49, 1
        %s150 = scalar_lea.sflag [#allocation5], %s149
        %s151 = sand.u32 %s49, 1
        %s152 = smul.addr %s151, 32
        %s153 = scalar_lea.vmem [#allocation4], %s152
        %p154 = pneg %p62
        %p155 = pneg %p59
        %p156 = pneg %p90
        %p157 = pneg %p87
        %s158 = sand.u32 %s77, 1
        %s159 = scalar_lea.sflag [#allocation6], %s158
        %s160 = sand.u32 %s77, 1
        %s161 = smul.addr %s160, 24
        %s162 = scalar_lea.vmem [#allocation7], %s161
        %s163 = sld [smem:[#allocation3]]
        %s164 = sld [smem:[#allocation3 + $0x1]]
        %s165 = sld [smem:[#allocation3 + $0x2]]
        %s166 = sld [smem:[#allocation3 + $0x3]]
        %s167 = sld [smem:[#allocation3 + $0x4]]
        %s168 = sld [smem:[#allocation3 + $0x5]]
        %s169 = sld [smem:[#allocation3 + $0x6]]
        %s170 = sld [smem:[#allocation3 + $0x7]]
        %s171 = sld [smem:[#allocation3 + $0x8]]
        %s172 = sld [smem:[#allocation3 + $0x9]]
        %s173 = sld [smem:[#allocation3 + $0xa]]
        %s174 = sld [smem:[#allocation3 + $0xb]]
        %s175 = sld [smem:[#allocation3 + $0xc]]
        %s176 = sld [smem:[#allocation3 + $0xd]]
        %s177 = sld [smem:[#allocation3 + $0xe]]
        %s178 = sld [smem:[#allocation3 + $0xf]]
        %s179 = sld [smem:[#allocation3 + $0x10]]
        %s180 = sld [smem:[#allocation3 + $0x11]]
        %s181 = sld [smem:[#allocation3 + $0x12]]
        %s182 = sld [smem:[#allocation3 + $0x13]]
        %s183 = sld [smem:[#allocation3 + $0x14]]
        %s184 = sld [smem:[#allocation3 + $0x15]]
        %s185 = sld [smem:[#allocation3 + $0x16]]
        %s186 = sld [smem:[#allocation3 + $0x17]]
        %s187 = sld [smem:[#allocation3 + $0x18]]
        %s188 = sld [smem:[#allocation3 + $0x19]]
        %s189 = sld [smem:[#allocation3 + $0x1a]]
        %s190 = sld [smem:[#allocation3 + $0x1b]]
        %s191 = sld [smem:[#allocation3 + $0x1c]]
        %s192 = sld [smem:[#allocation3 + $0x1d]]
        %v193 = vlaneseq
        %v194 = vand.u32 %v193, 127
        %v195 = vand.u32 %v194, 1
        %vm196 = vcmp.eq.s32.totalorder %v195, 0
        %v197 = vxor.u32 %v194, 1
        %198 = vrot.lane.b32.xlu0 %v194, 1
        %v199 = vpop.permute.xlu0 %198
        %vm200 = vcmp.eq.s32.totalorder %v199, %v197
        %v201 = vsel %vm196, -1.0, 1.0
        %v202 = vstv %s187
        %v203 = vstv %s190
        %v204 = vsel %vm196, %v202, %v203
        %v205 = vstv %s188
        %v206 = vstv %s191
        %v207 = vsel %vm196, %v205, %v206
        %v208 = vstv %s189
        %v209 = vstv %s192
        %v210 = vsel %vm196, %v208, %v209
        %v211 = vld [vmem:[%s143] sm:$0xff]
        %212 = vrot.lane.b32.xlu0 %v211, 1
        %v213 = vpop.permute.xlu0 %212
        %214 = vrot.lane.b32.xlu0 %v211, 127
        %v215 = vpop.permute.xlu0 %214
        %v216 = vsel %vm200, %v213, %v215
        %v217 = vmul.f32 %v201, %v216
        %s218 = sadd.s32 0, 8
        %s219 = scalar_lea.vmem %s143, %s218 [#allocation4]
        %v220 = vld [vmem:[%s219] sm:$0xff]
        %221 = vrot.lane.b32.xlu0 %v220, 1
        %v222 = vpop.permute.xlu0 %221
        %223 = vrot.lane.b32.xlu0 %v220, 127
        %v224 = vpop.permute.xlu0 %223
        %v225 = vsel %vm200, %v222, %v224
        %v226 = vmul.f32 %v201, %v225
        %s227 = sadd.s32 0, 16
        %s228 = scalar_lea.vmem %s143, %s227 [#allocation4]
        %v229 = vld [vmem:[%s228] sm:$0xff]
        %230 = vrot.lane.b32.xlu0 %v229, 1
        %v231 = vpop.permute.xlu0 %230
        %232 = vrot.lane.b32.xlu0 %v229, 127
        %v233 = vpop.permute.xlu0 %232
        %v234 = vsel %vm200, %v231, %v233
        %v235 = vmul.f32 %v201, %v234
        %s236 = sadd.s32 0, 24
        %s237 = scalar_lea.vmem %s143, %s236 [#allocation4]
        %v238 = vld [vmem:[%s237] sm:$0xff]
        %239 = vrot.lane.b32.xlu0 %v238, 1
        %v240 = vpop.permute.xlu0 %239
        %241 = vrot.lane.b32.xlu0 %v238, 127
        %v242 = vpop.permute.xlu0 %241
        %v243 = vsel %vm200, %v240, %v242
        %v244 = vmul.f32 %v201, %v243
        %v245 = vstv %s163
        %v246 = vmul.f32 %v245, %v211
        %v247 = vadd.f32 %v204, %v246
        %v248 = vstv %s175
        %v249 = vmul.f32 %v248, %v217
        %v250 = vadd.f32 %v247, %v249
        %v251 = vstv %s164
        %v252 = vmul.f32 %v251, %v220
        %v253 = vadd.f32 %v250, %v252
        %v254 = vstv %s176
        %v255 = vmul.f32 %v254, %v226
        %v256 = vadd.f32 %v253, %v255
        %v257 = vstv %s165
        %v258 = vmul.f32 %v257, %v229
        %v259 = vadd.f32 %v256, %v258
        %v260 = vstv %s177
        %v261 = vmul.f32 %v260, %v235
        %v262 = vadd.f32 %v259, %v261
        %v263 = vstv %s166
        %v264 = vmul.f32 %v263, %v238
        %v265 = vadd.f32 %v262, %v264
        %v266 = vstv %s178
        %v267 = vmul.f32 %v266, %v244
        %v268 = vadd.f32 %v265, %v267
        %269 = vst [vmem:[%s162] sm:$0xff] %v268
        %v270 = vstv %s167
        %v271 = vmul.f32 %v270, %v211
        %v272 = vadd.f32 %v207, %v271
        %v273 = vstv %s179
        %v274 = vmul.f32 %v273, %v217
        %v275 = vadd.f32 %v272, %v274
        %v276 = vstv %s168
        %v277 = vmul.f32 %v276, %v220
        %v278 = vadd.f32 %v275, %v277
        %v279 = vstv %s180
        %v280 = vmul.f32 %v279, %v226
        %v281 = vadd.f32 %v278, %v280
        %v282 = vstv %s169
        %v283 = vmul.f32 %v282, %v229
        %v284 = vadd.f32 %v281, %v283
        %v285 = vstv %s181
        %v286 = vmul.f32 %v285, %v235
        %v287 = vadd.f32 %v284, %v286
        %v288 = vstv %s170
        %v289 = vmul.f32 %v288, %v238
        %v290 = vadd.f32 %v287, %v289
        %v291 = vstv %s182
        %v292 = vmul.f32 %v291, %v244
        %v293 = vadd.f32 %v290, %v292
        %s294 = scalar_lea.vmem %s162, %s218 [#allocation7]
        %295 = vst [vmem:[%s294] sm:$0xff] %v293
        %v296 = vstv %s171
        %v297 = vmul.f32 %v296, %v211
        %v298 = vadd.f32 %v210, %v297
        %v299 = vstv %s183
        %v300 = vmul.f32 %v299, %v217
        %v301 = vadd.f32 %v298, %v300
        %v302 = vstv %s172
        %v303 = vmul.f32 %v302, %v220
        %v304 = vadd.f32 %v301, %v303
        %v305 = vstv %s184
        %v306 = vmul.f32 %v305, %v226
        %v307 = vadd.f32 %v304, %v306
        %v308 = vstv %s173
        %v309 = vmul.f32 %v308, %v229
        %v310 = vadd.f32 %v307, %v309
        %v311 = vstv %s185
        %v312 = vmul.f32 %v311, %v235
        %v313 = vadd.f32 %v310, %v312
        %v314 = vstv %s174
        %v315 = vmul.f32 %v314, %v238
        %v316 = vadd.f32 %v313, %v315
        %v317 = vstv %s186
        %v318 = vmul.f32 %v317, %v244
        %v319 = vadd.f32 %v316, %v318
        %s320 = scalar_lea.vmem %s162, %s227 [#allocation7]
        %321 = vst [vmem:[%s320] sm:$0xff] %v319
        %s322 = sand.u32 %s77, 1
        %s323 = scalar_lea.sflag [#allocation6], %s322
        %s324 = sand.u32 %s77, 1
        %s325 = smul.addr %s324, 24
        %s326 = scalar_lea.vmem [#allocation7], %s325
        // Predicated region
        $region29: #{tpu_custom_call.1} parent=23 // pred_check
          %p327 = pneg %p87
        $region30: #{tpu_custom_call.1} parent=23 // pred_check_branch
          %329 = sbr.rel (%p327) target = $region32
        $region31: #{tpu_custom_call.1} parent=23 // pred_region
          %331 = vsyncadd %s323, 0
          %s332 = smul.addr %s31, 3
          %s333 = sadd.s32 %s32, %s332
          %s334 = smul.addr %s333, 8
          %s335 = scalar_lea.hbm %s2, %s334
          %s336 = sshll.u32 %s326, 4
          %s337 = int_to_ptr.vmem [resolvable:$true] %s336
          %s338 = sshll.u32 %s335, 4
          %s339 = int_to_ptr.hbm [resolvable:$true] %s338
          %344 = dma.vmem_to_hbm [thread:$0]  %s337, 384, %s339, %s323, 128, 128, 8
        $region32: #{tpu_custom_call.1} parent=23 // pred_fallthru
          _
      $region24: #{tpu_custom_call.1} parent=5 // pred_fallthru
        _
      %p345 = scmp.le.s32.totalorder 2, %s22
      // Predicated region
      $region33: #{tpu_custom_call.1} parent=5 // pred_check
        %p346 = pneg %p345
      $region34: #{tpu_custom_call.1} parent=5 // pred_check_branch
        %348 = sbr.rel (%p346) target = $region36
      $region35: #{tpu_custom_call.1} parent=5 // pred_region
        %s349 = ssub.s32 %s22, 2
        // Predicated region
        $region37: #{tpu_custom_call.1} parent=35 // pred_check
          %p350 = pneg %p93
        $region38: #{tpu_custom_call.1} parent=35 // pred_check_branch
          %352 = sbr.rel (%p350) target = $region40
        $region39: #{tpu_custom_call.1} parent=35 // pred_region
          %s353 = sand.u32 %s78, 1
          %s354 = scalar_lea.sflag [#allocation6], %s353
          %s355 = sand.u32 %s78, 1
          %s356 = smul.addr %s355, 24
          %s357 = scalar_lea.vmem [#allocation7], %s356
          %359 = dma.done %s354, 384
        $region40: #{tpu_custom_call.1} parent=35 // pred_fallthru
          _
      $region36: #{tpu_custom_call.1} parent=5 // pred_fallthru
        _
    $region6: #{tpu_custom_call.1} parent=1 // loop_footer
      %s26 = sadd.s32 1, %s22
    $region7: #{tpu_custom_call.1} parent=1 // loop_footer_branch
      %21 = sbr.rel target = $region3
    $region8: #{tpu_custom_call.1} parent=1 // loop_exit
      _
    %360 = vsyncpa [#allocation5], 1
    %s361 = scalar_lea.sflag [#allocation5], 1
    %362 = vsyncpa %s361, 1
    %363 = vsyncpa [#allocation6], 1
    %s364 = scalar_lea.sflag [#allocation6], 1
    %365 = vsyncpa %s364, 1

</llo_original>
